<compile_context>
chip_gen: v7x
topology: tpu7x:2x2x1
jax: 0.10.0
libtpu: 0.0.40
codegen_flags: <defaults>
</compile_context>

<pallas_src>
import jax
import jax.numpy as jnp
from jax.experimental import pallas as pl
from jax.experimental.pallas import tpu as pltpu

LOG_STD_MAX = 2.0
LOG_STD_MIN = -5.0
# Folded affine: LOG_STD_MIN + 0.5*(MAX-MIN)*(t+1) == SCALE*t + SHIFT
LOG_STD_SCALE = 0.5 * (LOG_STD_MAX - LOG_STD_MIN)          # 3.5
LOG_STD_SHIFT = LOG_STD_MIN + LOG_STD_SCALE                # -1.5


def _round_up(x, m):
    return (x + m - 1) // m * m


def actor_kernel(x_ref, w1_ref, b1_ref, w2_ref, b2_ref, wh_ref, bh_ref, out_ref):
    """Fused MLP + packed dual head.

    out layout: lanes [0:split) = mean (identity), lanes [split:) = log_std
    (tanh-affine), with split = out_width // 2.
    """
    mm_dtype = w1_ref.dtype                      # bf16 or f32 matmul operands
    x = x_ref[...].astype(mm_dtype)              # cast inside kernel (VPU, free)

    # fc1 + relu (accumulate f32, elementwise f32)
    h1 = jnp.dot(x, w1_ref[...], preferred_element_type=jnp.float32) + b1_ref[...]
    h1 = jnp.maximum(h1, 0.0).astype(mm_dtype)

    # fc2 + relu
    h2 = jnp.dot(h1, w2_ref[...], preferred_element_type=jnp.float32) + b2_ref[...]
    h2 = jnp.maximum(h2, 0.0).astype(mm_dtype)

    # fused heads: single lane-dense matmul; mean and log_std share the slab
    z = jnp.dot(h2, wh_ref[...], preferred_element_type=jnp.float32) + bh_ref[...]

    split = z.shape[1] // 2                      # static lane split (64 or P)
    lane = jax.lax.broadcasted_iota(jnp.int32, z.shape, dimension=1)
    log_std = LOG_STD_SCALE * jnp.tanh(z) + LOG_STD_SHIFT
    out = jnp.where(lane < split, z, log_std)    # mean lanes pass through

    out_ref[...] = out.astype(out_ref.dtype)     # one unmasked 128-wide store


def pack_actor_params(params, act_dim, *, compute_dtype=jnp.bfloat16):
    """Fuse + pad the two head weights into one lane-dense slab (do once)."""
    w1, b1, w2, b2, wm, bm, wl, bl = params
    _, H = w1.shape
    A = act_dim

    if A <= 64:
        out_width = 128                          # single 128-lane slab
        split = 64
    else:
        split = _round_up(A, 128)
        out_width = 2 * split

    wh = jnp.zeros((H, out_width), compute_dtype)
    wh = wh.at[:, :A].set(wm.astype(compute_dtype))
    wh = wh.at[:, split:split + A].set(wl.astype(compute_dtype))
    bh = jnp.zeros((1, out_width), jnp.float32)
    bh = bh.at[:, :A].set(bm.astype(jnp.float32))
    bh = bh.at[:, split:split + A].set(bl.astype(jnp.float32))

    return dict(
        w1=w1.astype(compute_dtype), b1=b1.astype(jnp.float32),
        w2=w2.astype(compute_dtype), b2=b2.astype(jnp.float32),
        wh=wh, bh=bh,
    )


def _default_tile_b(B):
    # Tiny batches: one grid step (launch/latency bound anyway).
    if B < 256:
        return B
    # Medium/large batches: >= 2 grid steps (v7x megacore sharding + pipeline),
    # tile_b capped at 512 (fills the MXU, keeps f32 intermediates & VMEM small).
    for t in (512, 256, 128, 64, 32, 16, 8):
        if B % t == 0 and B // t >= 2:
            return t
    return B


def _vmem_limit_bytes(tile_b, D, H, out_width, w_itemsize, out_itemsize):
    weights = (D * H + H * H + H * out_width) * w_itemsize + (2 * H + out_width) * 4
    x_blocks = 2 * tile_b * D * 4                       # double-buffered x tiles
    out_blocks = 2 * tile_b * out_width * out_itemsize  # double-buffered out tiles
    interm = 3 * tile_b * max(H, out_width) * 4         # h1/h2/z f32 live values
    est = 2 * weights + x_blocks + out_blocks + 2 * interm
    return int(min(64 << 20, max(8 << 20, est)))        # portable across v5e/v6e/v7x


def actor_forward(x, packed, act_dim, *, tile_b=None, out_dtype=jnp.float32,
                  return_packed=False):
    """x: [B, obs_dim] float32. Returns (mean, log_std), each [B, act_dim]."""
    B, D = x.shape
    w1, b1, w2, b2, wh, bh = (packed[k] for k in ("w1", "b1", "w2", "b2", "wh", "bh"))
    H = w1.shape[1]
    out_width = wh.shape[1]
    split = out_width // 2
    A = act_dim
    assert w1.shape[0] == D and A <= split

    if tile_b is None:
        tile_b = _default_tile_b(B)
    if tile_b != B and (B % tile_b != 0 or tile_b % 8 != 0):
        raise ValueError(
            f"tile_b={tile_b} must equal B or be a multiple of 8 dividing B={B}")
    grid = (B // tile_b,)

    # weights/biases: same block every grid step (kept resident in VMEM)
    def invariant(shape):
        return pl.BlockSpec(shape, lambda i: (0,) * len(shape))

    in_specs = [
        pl.BlockSpec((tile_b, D), lambda i: (i, 0)),    # x (unpadded, f32)
        invariant(w1.shape), invariant(b1.shape),       # fc1
        invariant(w2.shape), invariant(b2.shape),       # fc2
        invariant(wh.shape), invariant(bh.shape),       # fused heads
    ]
    out_specs = pl.BlockSpec((tile_b, out_width), lambda i: (i, 0))

    weights = (w1, b1, w2, b2, wh, bh)
    out_itemsize = jnp.dtype(out_dtype).itemsize
    flops = 2 * B * (D * H + H * H + H * out_width)
    bytes_accessed = (
        x.size * x.dtype.itemsize
        + sum(int(w.size) * w.dtype.itemsize for w in weights)
        + B * out_width * out_itemsize
    )
    cost = pl.CostEstimate(flops=int(flops), transcendentals=int(B * out_width),
                           bytes_accessed=int(bytes_accessed))

    out = pl.pallas_call(
        actor_kernel,
        out_shape=jax.ShapeDtypeStruct((B, out_width), out_dtype),
        grid_spec=pltpu.PrefetchScalarGridSpec(
            num_scalar_prefetch=0,
            grid=grid,
            in_specs=in_specs,
            out_specs=out_specs,
        ),
        compiler_params=pltpu.CompilerParams(
            dimension_semantics=("parallel",),
            vmem_limit_bytes=_vmem_limit_bytes(
                tile_b, D, H, out_width, w1.dtype.itemsize, out_itemsize),
        ),
        cost_estimate=cost,
    )(x, *weights)

    if return_packed:
        return out                                   # consumer slices (stays fused)
    return out[:, :A], out[:, split:split + A]


def init_actor_params(key, obs_dim, act_dim, hidden=256):
    """Torch-style nn.Linear init: U(-1/sqrt(fan_in), +1/sqrt(fan_in))."""
    def linear(k, fan_in, fan_out):
        kw, kb = jax.random.split(k)
        bound = 1.0 / jnp.sqrt(float(fan_in))
        w = jax.random.uniform(kw, (fan_in, fan_out), jnp.float32, -bound, bound)
        b = jax.random.uniform(kb, (1, fan_out), jnp.float32, -bound, bound)
        return w, b

    k1, k2, k3, k4 = jax.random.split(key, 4)
    w1, b1 = linear(k1, obs_dim, hidden)
    w2, b2 = linear(k2, hidden, hidden)
    wm, bm = linear(k3, hidden, act_dim)
    wl, bl = linear(k4, hidden, act_dim)
    return (w1, b1, w2, b2, wm, bm, wl, bl)


def actor_forward_ref(x, params):
    w1, b1, w2, b2, wm, bm, wl, bl = params
    h1 = jnp.maximum(x @ w1 + b1, 0.0)
    h2 = jnp.maximum(h1 @ w2 + b2, 0.0)
    mean = h2 @ wm + bm
    ls = jnp.tanh(h2 @ wl + bl)
    ls = LOG_STD_MIN + 0.5 * (LOG_STD_MAX - LOG_STD_MIN) * (ls + 1.0)
    return mean, ls


if __name__ == "__main__":
    key = jax.random.PRNGKey(0)
    k_x, k_p = jax.random.split(key)

    B, OBS_DIM, ACT_DIM = 8, 32, 8        # small SAC-like shapes
    x = jax.random.normal(k_x, (B, OBS_DIM), dtype=jnp.float32)
    params = init_actor_params(k_p, OBS_DIM, ACT_DIM, hidden=256)
    mean_ref, log_std_ref = actor_forward_ref(x, params)

    # run under jit so the trailing act_dim-wide slices fuse with the call
    fwd = jax.jit(actor_forward,
                  static_argnames=("act_dim", "tile_b", "out_dtype", "return_packed"))

    # --- exact (f32 operand) path: tight tolerance vs. reference -------------
    packed_f32 = pack_actor_params(params, ACT_DIM, compute_dtype=jnp.float32)
    mean, log_std = jax.block_until_ready(fwd(x, packed_f32, act_dim=ACT_DIM))
    assert mean.shape == (B, ACT_DIM) and log_std.shape == (B, ACT_DIM)
    assert jnp.allclose(mean, mean_ref, atol=1e-4, rtol=1e-4)
    assert jnp.allclose(log_std, log_std_ref, atol=1e-4, rtol=1e-4)

    # --- fast (bf16 operand, f32 accumulate) path: looser tolerance ----------
    packed_bf16 = pack_actor_params(params, ACT_DIM, compute_dtype=jnp.bfloat16)
    mean_b, log_std_b = jax.block_until_ready(fwd(x, packed_bf16, act_dim=ACT_DIM))
    assert mean_b.shape == (B, ACT_DIM) and log_std_b.shape == (B, ACT_DIM)
    assert jnp.allclose(mean_b, mean_ref, atol=5e-2, rtol=5e-2)
    assert jnp.allclose(log_std_b, log_std_ref, atol=5e-2, rtol=5e-2)

    print("KERNEL_OK")
</pallas_src>

<mosaic_0001>
module attributes {stable_mosaic.version = 11 : i64} {
  func.func @actor_kernel(%arg0: i32, %arg1: memref<8x32xf32, #tpu.memory_space<vmem>>, %arg2: memref<32x256xf32, #tpu.memory_space<vmem>>, %arg3: memref<1x256xf32, #tpu.memory_space<vmem>>, %arg4: memref<256x256xf32, #tpu.memory_space<vmem>>, %arg5: memref<1x256xf32, #tpu.memory_space<vmem>>, %arg6: memref<256x128xf32, #tpu.memory_space<vmem>>, %arg7: memref<1x128xf32, #tpu.memory_space<vmem>>, %arg8: memref<8x128xf32, #tpu.memory_space<vmem>>) attributes {dimension_semantics = [#tpu.dimension_semantics<parallel>], iteration_bounds = array<i64: 1>, scalar_prefetch = 0 : i64, scratch_operands = 0 : i64, tpu.core_type = #tpu.core_type<tc>, window_params = [{transform_indices = @transform_0, window_bounds = array<i64: 8, 32>}, {pipeline_mode = #tpu.pipeline_mode<synchronous>, transform_indices = @transform_1, window_bounds = array<i64: 32, 256>}, {pipeline_mode = #tpu.pipeline_mode<synchronous>, transform_indices = @transform_2, window_bounds = array<i64: 1, 256>}, {pipeline_mode = #tpu.pipeline_mode<synchronous>, transform_indices = @transform_3, window_bounds = array<i64: 256, 256>}, {pipeline_mode = #tpu.pipeline_mode<synchronous>, transform_indices = @transform_4, window_bounds = array<i64: 1, 256>}, {pipeline_mode = #tpu.pipeline_mode<synchronous>, transform_indices = @transform_5, window_bounds = array<i64: 256, 128>}, {pipeline_mode = #tpu.pipeline_mode<synchronous>, transform_indices = @transform_6, window_bounds = array<i64: 1, 128>}, {transform_indices = @transform_7, window_bounds = array<i64: 8, 128>}]} {
    %c0 = arith.constant 0 : index
    %c0_0 = arith.constant 0 : index
    %0 = vector.load %arg1[%c0, %c0_0] : memref<8x32xf32, #tpu.memory_space<vmem>>, vector<8x32xf32>
    %c0_1 = arith.constant 0 : index
    %c0_2 = arith.constant 0 : index
    %1 = vector.load %arg2[%c0_1, %c0_2] : memref<32x256xf32, #tpu.memory_space<vmem>>, vector<32x256xf32>
    %cst = arith.constant dense<0.000000e+00> : vector<8x256xf32>
    %2 = tpu.matmul %0, %1, %cst {dimension_numbers = #tpu.dot_dimension_numbers<[1], [0], [0], [1], [0, 0, 1, 1], [], []>} : vector<8x32xf32>, vector<32x256xf32>, vector<8x256xf32> -> vector<8x256xf32>
    %c0_3 = arith.constant 0 : index
    %c0_4 = arith.constant 0 : index
    %3 = vector.load %arg3[%c0_3, %c0_4] : memref<1x256xf32, #tpu.memory_space<vmem>>, vector<1x256xf32>
    %4 = vector.broadcast %3 : vector<1x256xf32> to vector<8x256xf32>
    %5 = arith.addf %2, %4 : vector<8x256xf32>
    %cst_5 = arith.constant 0.000000e+00 : f32
    %6 = vector.broadcast %cst_5 : f32 to vector<8x256xf32>
    %7 = arith.maximumf %5, %6 : vector<8x256xf32>
    %c0_6 = arith.constant 0 : index
    %c0_7 = arith.constant 0 : index
    %8 = vector.load %arg4[%c0_6, %c0_7] : memref<256x256xf32, #tpu.memory_space<vmem>>, vector<256x256xf32>
    %cst_8 = arith.constant dense<0.000000e+00> : vector<8x256xf32>
    %9 = tpu.matmul %7, %8, %cst_8 {dimension_numbers = #tpu.dot_dimension_numbers<[1], [0], [0], [1], [0, 0, 1, 1], [], []>} : vector<8x256xf32>, vector<256x256xf32>, vector<8x256xf32> -> vector<8x256xf32>
    %c0_9 = arith.constant 0 : index
    %c0_10 = arith.constant 0 : index
    %10 = vector.load %arg5[%c0_9, %c0_10] : memref<1x256xf32, #tpu.memory_space<vmem>>, vector<1x256xf32>
    %11 = vector.broadcast %10 : vector<1x256xf32> to vector<8x256xf32>
    %12 = arith.addf %9, %11 : vector<8x256xf32>
    %cst_11 = arith.constant 0.000000e+00 : f32
    %13 = vector.broadcast %cst_11 : f32 to vector<8x256xf32>
    %14 = arith.maximumf %12, %13 : vector<8x256xf32>
    %c0_12 = arith.constant 0 : index
    %c0_13 = arith.constant 0 : index
    %15 = vector.load %arg6[%c0_12, %c0_13] : memref<256x128xf32, #tpu.memory_space<vmem>>, vector<256x128xf32>
    %cst_14 = arith.constant dense<0.000000e+00> : vector<8x128xf32>
    %16 = tpu.matmul %14, %15, %cst_14 {dimension_numbers = #tpu.dot_dimension_numbers<[1], [0], [0], [1], [0, 0, 1, 1], [], []>} : vector<8x256xf32>, vector<256x128xf32>, vector<8x128xf32> -> vector<8x128xf32>
    %c0_15 = arith.constant 0 : index
    %c0_16 = arith.constant 0 : index
    %17 = vector.load %arg7[%c0_15, %c0_16] : memref<1x128xf32, #tpu.memory_space<vmem>>, vector<1x128xf32>
    %18 = vector.broadcast %17 : vector<1x128xf32> to vector<8x128xf32>
    %19 = arith.addf %16, %18 : vector<8x128xf32>
    %20 = tpu.iota {dimensions = array<i32: 1>} : vector<8x128xi32>
    %21 = math.tanh %19 : vector<8x128xf32>
    %cst_17 = arith.constant 3.500000e+00 : f32
    %22 = vector.broadcast %cst_17 : f32 to vector<8x128xf32>
    %23 = arith.mulf %22, %21 : vector<8x128xf32>
    %cst_18 = arith.constant -1.500000e+00 : f32
    %24 = vector.broadcast %cst_18 : f32 to vector<8x128xf32>
    %25 = arith.addf %23, %24 : vector<8x128xf32>
    %c64_i32 = arith.constant 64 : i32
    %26 = vector.broadcast %c64_i32 : i32 to vector<8x128xi32>
    %27 = arith.cmpi slt, %20, %26 : vector<8x128xi32>
    %28 = arith.select %27, %19, %25 : vector<8x128xi1>, vector<8x128xf32>
    %c0_19 = arith.constant 0 : index
    %c0_20 = arith.constant 0 : index
    %29 = vector.load %arg8[%c0_19, %c0_20] : memref<8x128xf32, #tpu.memory_space<vmem>>, vector<8x128xf32>
    tpu.vector_store %arg8[%c0_19, %c0_20], %28 {strides = array<i32>} : memref<8x128xf32, #tpu.memory_space<vmem>>, vector<8x128xf32>,
    return
  }
  func.func @transform_0(%arg0: i32) -> (i32, i32) {
    %c0_i32 = arith.constant 0 : i32
    %c0_i32_0 = arith.constant 0 : i32
    return %arg0, %c0_i32 : i32, i32
  }
  func.func @transform_1(%arg0: i32) -> (i32, i32) {
    %c0_i32 = arith.constant 0 : i32
    %c0_i32_0 = arith.constant 0 : i32
    %c0_i32_1 = arith.constant 0 : i32
    return %c0_i32, %c0_i32_0 : i32, i32
  }
  func.func @transform_2(%arg0: i32) -> (i32, i32) {
    %c0_i32 = arith.constant 0 : i32
    %c0_i32_0 = arith.constant 0 : i32
    %c0_i32_1 = arith.constant 0 : i32
    return %c0_i32, %c0_i32_0 : i32, i32
  }
  func.func @transform_3(%arg0: i32) -> (i32, i32) {
    %c0_i32 = arith.constant 0 : i32
    %c0_i32_0 = arith.constant 0 : i32
    %c0_i32_1 = arith.constant 0 : i32
    return %c0_i32, %c0_i32_0 : i32, i32
  }
  func.func @transform_4(%arg0: i32) -> (i32, i32) {
    %c0_i32 = arith.constant 0 : i32
    %c0_i32_0 = arith.constant 0 : i32
    %c0_i32_1 = arith.constant 0 : i32
    return %c0_i32, %c0_i32_0 : i32, i32
  }
  func.func @transform_5(%arg0: i32) -> (i32, i32) {
    %c0_i32 = arith.constant 0 : i32
    %c0_i32_0 = arith.constant 0 : i32
    %c0_i32_1 = arith.constant 0 : i32
    return %c0_i32, %c0_i32_0 : i32, i32
  }
  func.func @transform_6(%arg0: i32) -> (i32, i32) {
    %c0_i32 = arith.constant 0 : i32
    %c0_i32_0 = arith.constant 0 : i32
    %c0_i32_1 = arith.constant 0 : i32
    return %c0_i32, %c0_i32_0 : i32, i32
  }
  func.func @transform_7(%arg0: i32) -> (i32, i32) {
    %c0_i32 = arith.constant 0 : i32
    %c0_i32_0 = arith.constant 0 : i32
    return %arg0, %c0_i32 : i32, i32
  }
}

</mosaic_0001>

<llo_original>
// kernel: actor_forward.1
$region0: #{actor_forward.1}
  #allocation0 [shape = 'u32[]', space=smem, size = 0x4, offset = 0x4, fixed_abs, tag = 'smem constant byte address 0x4 - core index']
  #allocation1 [shape = 'u32[144,128]{1,0:T(1,128)}', space=vmem, size = 0x12000, scoped, tag = 'internal scratch']
  %s0 = inlined_call_operand.hbm [shape: f32[8,32], index: 0, kind: input, shape index: {}]
  %s1 = inlined_call_operand.hbm [shape: f32[32,256], index: 1, kind: input, shape index: {}]
  %s2 = inlined_call_operand.vmem [shape: f32[1,256], index: 2, kind: input, shape index: {}]
  %s3 = inlined_call_operand.hbm [shape: f32[256,256], index: 3, kind: input, shape index: {}]
  %s4 = inlined_call_operand.vmem [shape: f32[1,256], index: 4, kind: input, shape index: {}]
  %s5 = inlined_call_operand.hbm [shape: f32[256,128], index: 5, kind: input, shape index: {}]
  %s6 = inlined_call_operand.vmem [shape: f32[1,128], index: 6, kind: input, shape index: {}]
  %s7 = inlined_call_operand.vmem [shape: f32[8,128], index: 7, kind: output, shape index: {}]
  %s8 = sld [smem:[#allocation0]]
  $region54: #{actor_forward.1} parent=0
    _
  %s10 = ssub.s32 1, %s8
  %s11 = scalar_select 0, %s10, %s8
  $region1: #{actor_forward.1} parent=0
    #allocation2 [shape = 'u8[4096]{0}', space=vmem, size = 0x1000, scoped, tag = 'input window, operand 0, single buffered']
    #allocation3 [shape = 's32[1]{0}', space=sflag, size = 0x4, scoped, tag = 'scoped memory for actor_forward.1']
    #allocation4 [shape = 'u8[32768]{0}', space=vmem, size = 0x8000, scoped, tag = 'input window, operand 1, single buffered']
    #allocation5 [shape = 's32[1]{0}', space=sflag, size = 0x4, scoped, tag = 'scoped memory for actor_forward.1']
    #allocation6 [shape = 'u8[262144]{0}', space=vmem, size = 0x40000, scoped, tag = 'input window, operand 3, single buffered']
    #allocation7 [shape = 'u8[131072]{0}', space=vmem, size = 0x20000, scoped, tag = 'input window, operand 5, single buffered']
    #allocation8 [shape = 's32[1]{0}', space=sflag, size = 0x4, scoped, tag = 'scoped memory for actor_forward.1']
    %12 = vsyncpa [#allocation3], 0
    %13 = vsyncpa [#allocation5], 0
    %14 = vsyncpa [#allocation8], 0
    // Predicated region
    $region2: #{actor_forward.1} parent=1 // pred_check
      _
    $region3: #{actor_forward.1} parent=1 // pred_check_branch
      %16 = sbr.rel (0) target = $region5
    $region4: #{actor_forward.1} parent=1 // pred_region
      %s18 = ssub.s32 128, 128
      %19 = vsyncadd [#allocation3], %s18
      %s21 = sshll.u32 [#allocation2], 4
      %s22 = int_to_ptr.vmem [resolvable:$true] %s21
      %24 = dma.hbm_to_vmem [thread:$0]  %s0, 128, %s22, [#allocation3]
    $region5: #{actor_forward.1} parent=1 // pred_fallthru
      _
    // Predicated region
    $region6: #{actor_forward.1} parent=1 // pred_check
      _
    $region7: #{actor_forward.1} parent=1 // pred_check_branch
      %26 = sbr.rel (0) target = $region9
    $region8: #{actor_forward.1} parent=1 // pred_region
      %s28 = ssub.s32 1024, 1024
      %29 = vsyncadd [#allocation5], %s28
      %s30 = sshll.u32 [#allocation4], 4
      %s31 = int_to_ptr.vmem [resolvable:$true] %s30
      %36 = dma.hbm_to_vmem [thread:$0]  %s1, 1024, %s31, [#allocation5], 256, 256, 16
    $region9: #{actor_forward.1} parent=1 // pred_fallthru
      _
    // Predicated region
    $region10: #{actor_forward.1} parent=1 // pred_check
      _
    $region11: #{actor_forward.1} parent=1 // pred_check_branch
      %38 = sbr.rel (0) target = $region13
    $region12: #{actor_forward.1} parent=1 // pred_region
      _
    $region13: #{actor_forward.1} parent=1 // pred_fallthru
      _
    // Predicated region
    $region14: #{actor_forward.1} parent=1 // pred_check
      _
    $region15: #{actor_forward.1} parent=1 // pred_check_branch
      %40 = sbr.rel (0) target = $region17
    $region16: #{actor_forward.1} parent=1 // pred_region
      %s42 = ssub.s32 8192, 8192
      %43 = vsyncadd [#allocation5], %s42
      %s44 = sshll.u32 [#allocation6], 4
      %s45 = int_to_ptr.vmem [resolvable:$true] %s44
      %50 = dma.hbm_to_vmem [thread:$0]  %s3, 8192, %s45, [#allocation5], 256, 256, 16
    $region17: #{actor_forward.1} parent=1 // pred_fallthru
      _
    // Predicated region
    $region18: #{actor_forward.1} parent=1 // pred_check
      _
    $region19: #{actor_forward.1} parent=1 // pred_check_branch
      %52 = sbr.rel (0) target = $region21
    $region20: #{actor_forward.1} parent=1 // pred_region
      _
    $region21: #{actor_forward.1} parent=1 // pred_fallthru
      _
    // Predicated region
    $region22: #{actor_forward.1} parent=1 // pred_check
      _
    $region23: #{actor_forward.1} parent=1 // pred_check_branch
      %54 = sbr.rel (0) target = $region25
    $region24: #{actor_forward.1} parent=1 // pred_region
      %s56 = ssub.s32 4096, 4096
      %57 = vsyncadd [#allocation8], %s56
      %s58 = sshll.u32 [#allocation7], 4
      %s59 = int_to_ptr.vmem [resolvable:$true] %s58
      %64 = dma.hbm_to_vmem [thread:$0]  %s5, 4096, %s59, [#allocation8], 128, 128, 8
    $region25: #{actor_forward.1} parent=1 // pred_fallthru
      _
    // Predicated region
    $region26: #{actor_forward.1} parent=1 // pred_check
      _
    $region27: #{actor_forward.1} parent=1 // pred_check_branch
      %66 = sbr.rel (0) target = $region29
    $region28: #{actor_forward.1} parent=1 // pred_region
      _
    $region29: #{actor_forward.1} parent=1 // pred_fallthru
      _
    // Predicated region
    $region30: #{actor_forward.1} parent=1 // pred_check
      _
    $region31: #{actor_forward.1} parent=1 // pred_check_branch
      %68 = sbr.rel (0) target = $region33
    $region32: #{actor_forward.1} parent=1 // pred_region
      %69 = dma.done [#allocation3], 128
    $region33: #{actor_forward.1} parent=1 // pred_fallthru
      _
    // Predicated region
    $region34: #{actor_forward.1} parent=1 // pred_check
      _
    $region35: #{actor_forward.1} parent=1 // pred_check_branch
      %71 = sbr.rel (0) target = $region37
    $region36: #{actor_forward.1} parent=1 // pred_region
      %72 = dma.done [#allocation5], 1024
    $region37: #{actor_forward.1} parent=1 // pred_fallthru
      _
    // Predicated region
    $region38: #{actor_forward.1} parent=1 // pred_check
      _
    $region39: #{actor_forward.1} parent=1 // pred_check_branch
      %74 = sbr.rel (0) target = $region41
    $region40: #{actor_forward.1} parent=1 // pred_region
      %75 = dma.done [#allocation5], 8192
    $region41: #{actor_forward.1} parent=1 // pred_fallthru
      _
    // Predicated region
    $region42: #{actor_forward.1} parent=1 // pred_check
      _
    $region43: #{actor_forward.1} parent=1 // pred_check_branch
      %77 = sbr.rel (0) target = $region45
    $region44: #{actor_forward.1} parent=1 // pred_region
      %78 = dma.done [#allocation8], 4096
    $region45: #{actor_forward.1} parent=1 // pred_fallthru
      _
    %v79 = vld [vmem:[#allocation2] sm:$0xff]
    %v80 = vld [vmem:[#allocation4] sm:$0xff]
    %v81 = vld [vmem:[#allocation4 + $0x8] sm:$0xff]
    %v82 = vld [vmem:[#allocation4 + $0x10] sm:$0xff]
    %v83 = vld [vmem:[#allocation4 + $0x18] sm:$0xff]
    %v84 = vld [vmem:[#allocation4 + $0x20] sm:$0xff]
    %v85 = vld [vmem:[#allocation4 + $0x28] sm:$0xff]
    %v86 = vld [vmem:[#allocation4 + $0x30] sm:$0xff]
    %v87 = vld [vmem:[#allocation4 + $0x38] sm:$0xff]
    %v88 = vld [vmem:[%s2] sm:$0x3]
    %v90 = vlaneseq
    %v91 = vshrl.u32 %v90, 7
    %v92 = vsub.s32 0, %v91
    %v93 = vrot.slane %v88, %v92
    %v94 = vlaneseq
    %v95 = vshrl.u32 %v94, 7
    %v96 = vsub.s32 1, %v95
    %v97 = vrot.slane %v88, %v96
    %vm100 = vcmask 261120
    %v102 = vsel %vm100, %v79, 0
    %104 = vmatprep.subr.mxu0 %v81
    %105 = vmatpush1.msra.mxu0 %v80
    %106 = vmatprep.subr.mxu0 %v83
    %107 = vmatpush1.msra.mxu0 %v82
    %108 = vmatprep.subr.mxu0 %v85
    %109 = vmatpush1.msra.mxu0 %v84
    %110 = vmatprep.subr.mxu0 %v87
    %111 = vmatpush1.msra.mxu0 %v86
    %112 = vmatprep.subr.mxu0 0.0
    %113 = vmatpush1.msra.mxu0 0.0
    %114 = vmatprep.subr.mxu0 0.0
    %115 = vmatpush1.msra.mxu0 0.0
    %116 = vmatprep.subr.mxu0 0.0
    %117 = vmatpush1.msra.mxu0 0.0
    %118 = vmatprep.subr.mxu0 0.0
    %119 = vmatpush1.msra.mxu0 0.0
    %120 = vmatprep.subr.mxu0 0.0
    %121 = vmatpush1.msra.mxu0 0.0
    %122 = vmatprep.subr.mxu0 0.0
    %123 = vmatpush1.msra.mxu0 0.0
    %124 = vmatprep.subr.mxu0 0.0
    %125 = vmatpush1.msra.mxu0 0.0
    %126 = vmatprep.subr.mxu0 0.0
    %127 = vmatpush1.msra.mxu0 0.0
    %128 = vmatprep.subr.mxu0 0.0
    %129 = vmatpush1.msra.mxu0 0.0
    %130 = vmatprep.subr.mxu0 0.0
    %131 = vmatpush1.msra.mxu0 0.0
    %132 = vmatprep.subr.mxu0 0.0
    %133 = vmatpush1.msra.mxu0 0.0
    %134 = vmatprep.subr.mxu0 0.0
    %135 = vmatpush1.msra.mxu0 0.0
    %136 = vmatprep.subr.mxu0 0.0
    %137 = vmatpush1.msra.mxu0 0.0
    %138 = vmatprep.subr.mxu0 0.0
    %139 = vmatpush1.msra.mxu0 0.0
    %140 = vmatprep.subr.mxu0 0.0
    %141 = vmatpush1.msra.mxu0 0.0
    %142 = vmatprep.subr.mxu0 0.0
    %143 = vmatpush1.msra.mxu0 0.0
    %144 = vmatprep.subr.mxu0 0.0
    %145 = vmatpush1.msra.mxu0 0.0
    %146 = vmatprep.subr.mxu0 0.0
    %147 = vmatpush1.msra.mxu0 0.0
    %148 = vmatprep.subr.mxu0 0.0
    %149 = vmatpush1.msra.mxu0 0.0
    %150 = vmatprep.subr.mxu0 0.0
    %151 = vmatpush1.msra.mxu0 0.0
    %152 = vmatprep.subr.mxu0 0.0
    %153 = vmatpush1.msra.mxu0 0.0
    %154 = vmatprep.subr.mxu0 0.0
    %155 = vmatpush1.msra.mxu0 0.0
    %156 = vmatprep.subr.mxu0 0.0
    %157 = vmatpush1.msra.mxu0 0.0
    %158 = vmatprep.subr.mxu0 0.0
    %159 = vmatpush1.msra.mxu0 0.0
    %160 = vmatprep.subr.mxu0 0.0
    %161 = vmatpush1.msra.mxu0 0.0
    %162 = vmatprep.subr.mxu0 0.0
    %163 = vmatpush1.msra.mxu0 0.0
    %164 = vmatprep.subr.mxu0 0.0
    %165 = vmatpush1.msra.mxu0 0.0
    %166 = vmatprep.subr.mxu0 0.0
    %167 = vmatpush1.msra.mxu0 0.0
    %168 = vmatprep.mubr.f32.mxu0 0.0
    %169 = vmatmul.mubr.f32.gmra.mrb[0].mxu0 %v102
    %v170 = vpop.f32.mrb[0].mxu0
    %v171 = vadd.f32 %v93, %v170
    %v172 = vpop.f32.mrb[0].mxu0
    %v173 = vadd.f32 %v97, %v172
    %174 = vdwg.mxu0
    %v175 = vmax.f32 %v171, 0.0
    %v176 = vmax.f32 %v173, 0.0
    %v177 = vld [vmem:[#allocation6] sm:$0xff]
    %v178 = vld [vmem:[#allocation6 + $0x8] sm:$0xff]
    %v179 = vld [vmem:[#allocation6 + $0x10] sm:$0xff]
    %v180 = vld [vmem:[#allocation6 + $0x18] sm:$0xff]
    %v181 = vld [vmem:[#allocation6 + $0x20] sm:$0xff]
    %v182 = vld [vmem:[#allocation6 + $0x28] sm:$0xff]
    %v183 = vld [vmem:[#allocation6 + $0x30] sm:$0xff]
    %v184 = vld [vmem:[#allocation6 + $0x38] sm:$0xff]
    %v185 = vld [vmem:[#allocation6 + $0x40] sm:$0xff]
    %v186 = vld [vmem:[#allocation6 + $0x48] sm:$0xff]
    %v187 = vld [vmem:[#allocation6 + $0x50] sm:$0xff]
    %v188 = vld [vmem:[#allocation6 + $0x58] sm:$0xff]
    %v189 = vld [vmem:[#allocation6 + $0x60] sm:$0xff]
    %v190 = vld [vmem:[#allocation6 + $0x68] sm:$0xff]
    %v191 = vld [vmem:[#allocation6 + $0x70] sm:$0xff]
    %v192 = vld [vmem:[#allocation6 + $0x78] sm:$0xff]
    %v193 = vld [vmem:[#allocation6 + $0x80] sm:$0xff]
    %v194 = vld [vmem:[#allocation6 + $0x88] sm:$0xff]
    %v195 = vld [vmem:[#allocation6 + $0x90] sm:$0xff]
    %v196 = vld [vmem:[#allocation6 + $0x98] sm:$0xff]
    %v197 = vld [vmem:[#allocation6 + $0xa0] sm:$0xff]
    %v198 = vld [vmem:[#allocation6 + $0xa8] sm:$0xff]
    %v199 = vld [vmem:[#allocation6 + $0xb0] sm:$0xff]
    %v200 = vld [vmem:[#allocation6 + $0xb8] sm:$0xff]
    %v201 = vld [vmem:[#allocation6 + $0xc0] sm:$0xff]
    %v202 = vld [vmem:[#allocation6 + $0xc8] sm:$0xff]
    %v203 = vld [vmem:[#allocation6 + $0xd0] sm:$0xff]
    %v204 = vld [vmem:[#allocation6 + $0xd8] sm:$0xff]
    %v205 = vld [vmem:[#allocation6 + $0xe0] sm:$0xff]
    %v206 = vld [vmem:[#allocation6 + $0xe8] sm:$0xff]
    %v207 = vld [vmem:[#allocation6 + $0xf0] sm:$0xff]
    %v208 = vld [vmem:[#allocation6 + $0xf8] sm:$0xff]
    %v209 = vld [vmem:[#allocation6 + $0x100] sm:$0xff]
    %v210 = vld [vmem:[#allocation6 + $0x108] sm:$0xff]
    %v211 = vld [vmem:[#allocation6 + $0x110] sm:$0xff]
    %v212 = vld [vmem:[#allocation6 + $0x118] sm:$0xff]
    %v213 = vld [vmem:[#allocation6 + $0x120] sm:$0xff]
    %v214 = vld [vmem:[#allocation6 + $0x128] sm:$0xff]
    %v215 = vld [vmem:[#allocation6 + $0x130] sm:$0xff]
    %v216 = vld [vmem:[#allocation6 + $0x138] sm:$0xff]
    %v217 = vld [vmem:[#allocation6 + $0x140] sm:$0xff]
    %v218 = vld [vmem:[#allocation6 + $0x148] sm:$0xff]
    %v219 = vld [vmem:[#allocation6 + $0x150] sm:$0xff]
    %v220 = vld [vmem:[#allocation6 + $0x158] sm:$0xff]
    %v221 = vld [vmem:[#allocation6 + $0x160] sm:$0xff]
    %v222 = vld [vmem:[#allocation6 + $0x168] sm:$0xff]
    %v223 = vld [vmem:[#allocation6 + $0x170] sm:$0xff]
    %v224 = vld [vmem:[#allocation6 + $0x178] sm:$0xff]
    %v225 = vld [vmem:[#allocation6 + $0x180] sm:$0xff]
    %v226 = vld [vmem:[#allocation6 + $0x188] sm:$0xff]
    %v227 = vld [vmem:[#allocation6 + $0x190] sm:$0xff]
    %v228 = vld [vmem:[#allocation6 + $0x198] sm:$0xff]
    %v229 = vld [vmem:[#allocation6 + $0x1a0] sm:$0xff]
    %v230 = vld [vmem:[#allocation6 + $0x1a8] sm:$0xff]
    %v231 = vld [vmem:[#allocation6 + $0x1b0] sm:$0xff]
    %v232 = vld [vmem:[#allocation6 + $0x1b8] sm:$0xff]
    %v233 = vld [vmem:[#allocation6 + $0x1c0] sm:$0xff]
    %v234 = vld [vmem:[#allocation6 + $0x1c8] sm:$0xff]
    %v235 = vld [vmem:[#allocation6 + $0x1d0] sm:$0xff]
    %v236 = vld [vmem:[#allocation6 + $0x1d8] sm:$0xff]
    %v237 = vld [vmem:[#allocation6 + $0x1e0] sm:$0xff]
    %v238 = vld [vmem:[#allocation6 + $0x1e8] sm:$0xff]
    %v239 = vld [vmem:[#allocation6 + $0x1f0] sm:$0xff]
    %v240 = vld [vmem:[#allocation6 + $0x1f8] sm:$0xff]
    %v241 = vld [vmem:[%s4] sm:$0x3]
    %v243 = vlaneseq
    %v244 = vshrl.u32 %v243, 7
    %v245 = vsub.s32 0, %v244
    %v246 = vrot.slane %v241, %v245
    %v247 = vlaneseq
    %v248 = vshrl.u32 %v247, 7
    %v249 = vsub.s32 1, %v248
    %v250 = vrot.slane %v241, %v249
    %253 = vmatprep.subr.mxu0 %v178
    %254 = vmatpush1.msra.mxu0 %v177
    %255 = vmatprep.subr.mxu0 %v180
    %256 = vmatpush1.msra.mxu0 %v179
    %257 = vmatprep.subr.mxu0 %v182
    %258 = vmatpush1.msra.mxu0 %v181
    %259 = vmatprep.subr.mxu0 %v184
    %260 = vmatpush1.msra.mxu0 %v183
    %261 = vmatprep.subr.mxu0 %v186
    %262 = vmatpush1.msra.mxu0 %v185
    %263 = vmatprep.subr.mxu0 %v188
    %264 = vmatpush1.msra.mxu0 %v187
    %265 = vmatprep.subr.mxu0 %v190
    %266 = vmatpush1.msra.mxu0 %v189
    %267 = vmatprep.subr.mxu0 %v192
    %268 = vmatpush1.msra.mxu0 %v191
    %269 = vmatprep.subr.mxu0 %v194
    %270 = vmatpush1.msra.mxu0 %v193
    %271 = vmatprep.subr.mxu0 %v196
    %272 = vmatpush1.msra.mxu0 %v195
    %273 = vmatprep.subr.mxu0 %v198
    %274 = vmatpush1.msra.mxu0 %v197
    %275 = vmatprep.subr.mxu0 %v200
    %276 = vmatpush1.msra.mxu0 %v199
    %277 = vmatprep.subr.mxu0 %v202
    %278 = vmatpush1.msra.mxu0 %v201
    %279 = vmatprep.subr.mxu0 %v204
    %280 = vmatpush1.msra.mxu0 %v203
    %281 = vmatprep.subr.mxu0 %v206
    %282 = vmatpush1.msra.mxu0 %v205
    %283 = vmatprep.subr.mxu0 %v208
    %284 = vmatpush1.msra.mxu0 %v207
    %285 = vmatprep.subr.mxu0 %v210
    %286 = vmatpush1.msra.mxu0 %v209
    %287 = vmatprep.subr.mxu0 %v212
    %288 = vmatpush1.msra.mxu0 %v211
    %289 = vmatprep.subr.mxu0 %v214
    %290 = vmatpush1.msra.mxu0 %v213
    %291 = vmatprep.subr.mxu0 %v216
    %292 = vmatpush1.msra.mxu0 %v215
    %293 = vmatprep.subr.mxu0 %v218
    %294 = vmatpush1.msra.mxu0 %v217
    %295 = vmatprep.subr.mxu0 %v220
    %296 = vmatpush1.msra.mxu0 %v219
    %297 = vmatprep.subr.mxu0 %v222
    %298 = vmatpush1.msra.mxu0 %v221
    %299 = vmatprep.subr.mxu0 %v224
    %300 = vmatpush1.msra.mxu0 %v223
    %301 = vmatprep.subr.mxu0 %v226
    %302 = vmatpush1.msra.mxu0 %v225
    %303 = vmatprep.subr.mxu0 %v228
    %304 = vmatpush1.msra.mxu0 %v227
    %305 = vmatprep.subr.mxu0 %v230
    %306 = vmatpush1.msra.mxu0 %v229
    %307 = vmatprep.subr.mxu0 %v232
    %308 = vmatpush1.msra.mxu0 %v231
    %309 = vmatprep.subr.mxu0 %v234
    %310 = vmatpush1.msra.mxu0 %v233
    %311 = vmatprep.subr.mxu0 %v236
    %312 = vmatpush1.msra.mxu0 %v235
    %313 = vmatprep.subr.mxu0 %v238
    %314 = vmatpush1.msra.mxu0 %v237
    %315 = vmatprep.subr.mxu0 %v240
    %316 = vmatpush1.msra.mxu0 %v239
    %317 = vmatprep.mubr.f32.mxu0 %v176
    %318 = vmatmul.mubr.f32.gmra.mrb[0].mxu0 %v175
    %v319 = vpop.f32.mrb[0].mxu0
    %v320 = vadd.f32 %v246, %v319
    %v321 = vpop.f32.mrb[0].mxu0
    %v322 = vadd.f32 %v250, %v321
    %323 = vdwg.mxu0
    %v324 = vmax.f32 %v320, 0.0
    %v325 = vmax.f32 %v322, 0.0
    %v326 = vld [vmem:[#allocation7] sm:$0xff]
    %v327 = vld [vmem:[#allocation7 + $0x8] sm:$0xff]
    %v328 = vld [vmem:[#allocation7 + $0x10] sm:$0xff]
    %v329 = vld [vmem:[#allocation7 + $0x18] sm:$0xff]
    %v330 = vld [vmem:[#allocation7 + $0x20] sm:$0xff]
    %v331 = vld [vmem:[#allocation7 + $0x28] sm:$0xff]
    %v332 = vld [vmem:[#allocation7 + $0x30] sm:$0xff]
    %v333 = vld [vmem:[#allocation7 + $0x38] sm:$0xff]
    %v334 = vld [vmem:[#allocation7 + $0x40] sm:$0xff]
    %v335 = vld [vmem:[#allocation7 + $0x48] sm:$0xff]
    %v336 = vld [vmem:[#allocation7 + $0x50] sm:$0xff]
    %v337 = vld [vmem:[#allocation7 + $0x58] sm:$0xff]
    %v338 = vld [vmem:[#allocation7 + $0x60] sm:$0xff]
    %v339 = vld [vmem:[#allocation7 + $0x68] sm:$0xff]
    %v340 = vld [vmem:[#allocation7 + $0x70] sm:$0xff]
    %v341 = vld [vmem:[#allocation7 + $0x78] sm:$0xff]
    %v342 = vld [vmem:[#allocation7 + $0x80] sm:$0xff]
    %v343 = vld [vmem:[#allocation7 + $0x88] sm:$0xff]
    %v344 = vld [vmem:[#allocation7 + $0x90] sm:$0xff]
    %v345 = vld [vmem:[#allocation7 + $0x98] sm:$0xff]
    %v346 = vld [vmem:[#allocation7 + $0xa0] sm:$0xff]
    %v347 = vld [vmem:[#allocation7 + $0xa8] sm:$0xff]
    %v348 = vld [vmem:[#allocation7 + $0xb0] sm:$0xff]
    %v349 = vld [vmem:[#allocation7 + $0xb8] sm:$0xff]
    %v350 = vld [vmem:[#allocation7 + $0xc0] sm:$0xff]
    %v351 = vld [vmem:[#allocation7 + $0xc8] sm:$0xff]
    %v352 = vld [vmem:[#allocation7 + $0xd0] sm:$0xff]
    %v353 = vld [vmem:[#allocation7 + $0xd8] sm:$0xff]
    %v354 = vld [vmem:[#allocation7 + $0xe0] sm:$0xff]
    %v355 = vld [vmem:[#allocation7 + $0xe8] sm:$0xff]
    %v356 = vld [vmem:[#allocation7 + $0xf0] sm:$0xff]
    %v357 = vld [vmem:[#allocation7 + $0xf8] sm:$0xff]
    %v358 = vld [vmem:[%s6] sm:$0x1]
    %v360 = vlaneseq
    %v361 = vshrl.u32 %v360, 7
    %v362 = vsub.s32 0, %v361
    %v363 = vrot.slane %v358, %v362
    %365 = vmatprep.subr.mxu0 0.0
    %366 = vmatpush1.msra.mxu0 %v326
    %367 = vmatprep.subr.mxu0 0.0
    %368 = vmatpush1.msra.mxu0 %v327
    %369 = vmatprep.subr.mxu0 0.0
    %370 = vmatpush1.msra.mxu0 %v328
    %371 = vmatprep.subr.mxu0 0.0
    %372 = vmatpush1.msra.mxu0 %v329
    %373 = vmatprep.subr.mxu0 0.0
    %374 = vmatpush1.msra.mxu0 %v330
    %375 = vmatprep.subr.mxu0 0.0
    %376 = vmatpush1.msra.mxu0 %v331
    %377 = vmatprep.subr.mxu0 0.0
    %378 = vmatpush1.msra.mxu0 %v332
    %379 = vmatprep.subr.mxu0 0.0
    %380 = vmatpush1.msra.mxu0 %v333
    %381 = vmatprep.subr.mxu0 0.0
    %382 = vmatpush1.msra.mxu0 %v334
    %383 = vmatprep.subr.mxu0 0.0
    %384 = vmatpush1.msra.mxu0 %v335
    %385 = vmatprep.subr.mxu0 0.0
    %386 = vmatpush1.msra.mxu0 %v336
    %387 = vmatprep.subr.mxu0 0.0
    %388 = vmatpush1.msra.mxu0 %v337
    %389 = vmatprep.subr.mxu0 0.0
    %390 = vmatpush1.msra.mxu0 %v338
    %391 = vmatprep.subr.mxu0 0.0
    %392 = vmatpush1.msra.mxu0 %v339
    %393 = vmatprep.subr.mxu0 0.0
    %394 = vmatpush1.msra.mxu0 %v340
    %395 = vmatprep.subr.mxu0 0.0
    %396 = vmatpush1.msra.mxu0 %v341
    %397 = vmatprep.subr.mxu0 0.0
    %398 = vmatpush1.msra.mxu0 %v342
    %399 = vmatprep.subr.mxu0 0.0
    %400 = vmatpush1.msra.mxu0 %v343
    %401 = vmatprep.subr.mxu0 0.0
    %402 = vmatpush1.msra.mxu0 %v344
    %403 = vmatprep.subr.mxu0 0.0
    %404 = vmatpush1.msra.mxu0 %v345
    %405 = vmatprep.subr.mxu0 0.0
    %406 = vmatpush1.msra.mxu0 %v346
    %407 = vmatprep.subr.mxu0 0.0
    %408 = vmatpush1.msra.mxu0 %v347
    %409 = vmatprep.subr.mxu0 0.0
    %410 = vmatpush1.msra.mxu0 %v348
    %411 = vmatprep.subr.mxu0 0.0
    %412 = vmatpush1.msra.mxu0 %v349
    %413 = vmatprep.subr.mxu0 0.0
    %414 = vmatpush1.msra.mxu0 %v350
    %415 = vmatprep.subr.mxu0 0.0
    %416 = vmatpush1.msra.mxu0 %v351
    %417 = vmatprep.subr.mxu0 0.0
    %418 = vmatpush1.msra.mxu0 %v352
    %419 = vmatprep.subr.mxu0 0.0
    %420 = vmatpush1.msra.mxu0 %v353
    %421 = vmatprep.subr.mxu0 0.0
    %422 = vmatpush1.msra.mxu0 %v354
    %423 = vmatprep.subr.mxu0 0.0
    %424 = vmatpush1.msra.mxu0 %v355
    %425 = vmatprep.subr.mxu0 0.0
    %426 = vmatpush1.msra.mxu0 %v356
    %427 = vmatprep.subr.mxu0 0.0
    %428 = vmatpush1.msra.mxu0 %v357
    %429 = vmatprep.mubr.f32.mxu0 %v325
    %430 = vmatmul.mubr.f32.gmra.mrb[0].mxu0 %v324
    %v431 = vpop.f32.mrb[0].mxu0
    %v432 = vadd.f32 %v363, %v431
    %v433 = vpop.f32.mrb[0].mxu0
    %434 = vdwg.mxu0
    %v435 = vlaneseq
    %v436 = vand.u32 %v435, 127
    %v437 = vtanh.pop %v432
    %v438 = vmul.f32 %v437, 3.5
    %v439 = vadd.f32 %v438, -1.5
    %vm440 = vcmp.lt.s32.totalorder %v436, 64
    %v441 = vsel %vm440, %v432, %v439
    %442 = vst [vmem:[%s7] sm:$0xff] %v441
    // Predicated region
    $region46: #{actor_forward.1} parent=1 // pred_check
      _
    $region47: #{actor_forward.1} parent=1 // pred_check_branch
      %444 = sbr.rel (0) target = $region49
    $region48: #{actor_forward.1} parent=1 // pred_region
      _
    $region49: #{actor_forward.1} parent=1 // pred_fallthru
      _
    // Predicated region
    $region50: #{actor_forward.1} parent=1 // pred_check
      _
    $region51: #{actor_forward.1} parent=1 // pred_check_branch
      %446 = sbr.rel (0) target = $region53
    $region52: #{actor_forward.1} parent=1 // pred_region
      _
    $region53: #{actor_forward.1} parent=1 // pred_fallthru
      _
    %447 = vsyncpa [#allocation3], 1
    %448 = vsyncpa [#allocation5], 1
    %449 = vsyncpa [#allocation8], 1

</llo_original>
